<compile_context>
chip_gen: v7x
topology: tpu7x:2x2x1
jax: 0.10.0
libtpu: 0.0.40
codegen_flags: <defaults>
</compile_context>

<pallas_src>
import functools

import jax
import jax.numpy as jnp
from jax import lax
from jax.experimental import pallas as pl
from jax.experimental.pallas import tpu as pltpu


_TARGET_GRID_MIN = 8  # aim for >=8 row-grid steps (pipelining + megacore split)


def _cdiv(a, b):
    return -(-a // b)


def _round_up(a, m):
    return _cdiv(a, m) * m


def _vmem_budgets():
    """Generation-aware VMEM budgets (pipeline budget, vmem_limit_bytes)."""
    try:
        cap = int(pltpu.get_tpu_info().vmem_capacity_bytes)
    except Exception:
        cap = 64 << 20  # conservative: v7x per-TensorCore VMEM
    limit = min(max(cap - (16 << 20), 48 << 20), 112 << 20)
    budget = max(limit - (8 << 20), 40 << 20)
    return budget, limit


# ----------------------------------------------------------------------------
# Path 1: full-hw row tiles (common case)
# ----------------------------------------------------------------------------
def _adain_rows_kernel(c_ref, s_ref, o_ref, *, eps, n_spatial):
    """One (tb, hw) row-tile: per-row AdaIN with two-pass (centered) stats."""
    inv_n = 1.0 / n_spatial
    inv_nm1 = 1.0 / max(n_spatial - 1, 1)  # torch.std default: unbiased (N-1)

    # Pass 1: means, f32 accumulation straight off the refs (no pinned copies).
    c_mean = jnp.sum(c_ref[...], axis=-1, keepdims=True, dtype=jnp.float32) * inv_n
    s_mean = jnp.sum(s_ref[...], axis=-1, keepdims=True, dtype=jnp.float32) * inv_n

    # Pass 2: centered squares on the VMEM-resident tile (no extra HBM
    # traffic) -- numerically robust vs. the one-pass sum-of-squares formula.
    # TODO(synk): on v7x with bf16 inputs these reductions could be offloaded
    # to the MXU (dot with a ones vector) if the VALU slot becomes binding.
    d = c_ref[...].astype(jnp.float32) - c_mean  # reused for the output FMA
    e = s_ref[...].astype(jnp.float32) - s_mean
    c_std = jnp.sqrt(jnp.sum(d * d, axis=-1, keepdims=True) * inv_nm1)
    s_std = jnp.sqrt(jnp.sum(e * e, axis=-1, keepdims=True) * inv_nm1)

    # Fold normalization into one per-row affine: out = d * scale + s_mean.
    denom = c_std + eps
    inv = pl.reciprocal(denom, approx=True)  # EUP
    inv = inv * (2.0 - denom * inv)          # one Newton step -> f32 accuracy
    scale = s_std * inv
    o_ref[...] = (d * scale + s_mean).astype(o_ref.dtype)


def _single_pass_row_tile(rows, hw, dsize, pipe_budget):
    """Largest row tile (multiple of 8) fitting the VMEM budget, keeping
    >= _TARGET_GRID_MIN grid steps when rows allow.  None -> doesn't fit."""
    # 3 arrays (c, s, out) double-buffered at input dtype + ~4 f32 tile temps.
    per_row = (3 * 2 * dsize + 4 * 4) * hw
    tb_vmem = (pipe_budget // per_row) // 8 * 8
    if tb_vmem < 8:
        return None
    tb_grid = _round_up(_cdiv(rows, _TARGET_GRID_MIN), 8)
    return max(8, min(tb_vmem, tb_grid, _round_up(rows, 8)))


def _adain_single_pass(c2, s2, rows, hw, eps, dsize, tb, vmem_limit):
    grid = (_cdiv(rows, tb),)
    kernel = functools.partial(_adain_rows_kernel, eps=eps, n_spatial=hw)
    return pl.pallas_call(
        kernel,
        out_shape=jax.ShapeDtypeStruct((rows, hw), c2.dtype),
        grid_spec=pltpu.PrefetchScalarGridSpec(
            num_scalar_prefetch=0,
            grid=grid,
            in_specs=[
                pl.BlockSpec((tb, hw), lambda i: (i, 0)),
                pl.BlockSpec((tb, hw), lambda i: (i, 0)),
            ],
            out_specs=pl.BlockSpec((tb, hw), lambda i: (i, 0)),
        ),
        compiler_params=pltpu.CompilerParams(
            dimension_semantics=("parallel",),
            vmem_limit_bytes=int(vmem_limit),
        ),
        cost_estimate=pl.CostEstimate(
            flops=10 * rows * hw,
            transcendentals=3 * rows,
            bytes_accessed=3 * rows * hw * dsize,
        ),
    )(c2, s2)


# ----------------------------------------------------------------------------
# Path 2: hw-tiled fallback for very large H*W (stats pass + apply pass)
# ----------------------------------------------------------------------------
def _stats_kernel(c_ref, s_ref, scale_ref, shift_ref,
                  c_mean_sc, c_m2_sc, s_mean_sc, s_m2_sc, *, eps, hw, thw):
    """Per-row mean/M2 accumulated across hw tiles with Chan's merge formula;
    emits per-row scale/shift on the last hw tile."""
    k = pl.program_id(1)
    n_tiles = pl.num_programs(1)
    tb = c_ref.shape[0]

    @pl.when(k == 0)
    def _():
        c_mean_sc[...] = jnp.zeros_like(c_mean_sc)
        c_m2_sc[...] = jnp.zeros_like(c_m2_sc)
        s_mean_sc[...] = jnp.zeros_like(s_mean_sc)
        s_m2_sc[...] = jnp.zeros_like(s_m2_sc)

    # Only the last hw tile can be partial; mask its padding lanes in-kernel.
    lane = lax.broadcasted_iota(jnp.int32, (tb, thw), 1)
    valid = hw - k * thw
    mask = lane < valid
    n_b = jnp.minimum(valid, thw).astype(jnp.float32)
    n_a = (k * thw).astype(jnp.float32)
    n_ab = n_a + n_b

    def accumulate(x_ref, mean_sc, m2_sc):
        x = x_ref[...].astype(jnp.float32)
        xv = jnp.where(mask, x, 0.0)
        loc_mean = jnp.sum(xv, axis=-1, keepdims=True) / n_b
        d = jnp.where(mask, x - loc_mean, 0.0)
        loc_m2 = jnp.sum(d * d, axis=-1, keepdims=True)
        delta = loc_mean - mean_sc[...]
        mean_sc[...] = mean_sc[...] + delta * (n_b / n_ab)
        m2_sc[...] = m2_sc[...] + loc_m2 + (delta * delta) * (n_a * n_b / n_ab)

    accumulate(c_ref, c_mean_sc, c_m2_sc)
    accumulate(s_ref, s_mean_sc, s_m2_sc)

    @pl.when(k == n_tiles - 1)
    def _():
        inv_nm1 = 1.0 / max(hw - 1, 1)
        c_std = jnp.sqrt(jnp.maximum(c_m2_sc[...], 0.0) * inv_nm1)
        s_std = jnp.sqrt(jnp.maximum(s_m2_sc[...], 0.0) * inv_nm1)
        denom = c_std + eps
        inv = pl.reciprocal(denom, approx=True)
        inv = inv * (2.0 - denom * inv)
        scale = s_std * inv
        scale_ref[...] = scale
        shift_ref[...] = s_mean_sc[...] - c_mean_sc[...] * scale


def _apply_kernel(c_ref, scale_ref, shift_ref, o_ref):
    o_ref[...] = (c_ref[...].astype(jnp.float32) * scale_ref[...]
                  + shift_ref[...]).astype(o_ref.dtype)


def _adain_two_pass(c2, s2, rows, hw, eps, dsize, pipe_budget, vmem_limit,
                    thw_override=None):
    tb = min(_round_up(rows, 8), 64)
    if thw_override is not None:
        thw = min(_round_up(min(thw_override, hw), 128), _round_up(hw, 128))
    else:
        # Size the lane tile off the stats pass: 2 inputs double-buffered at
        # the input dtype + ~4 f32 tile temporaries.
        per_lane = tb * (2 * 2 * dsize + 4 * 4)
        thw = max(128, (pipe_budget // per_lane) // 128 * 128)
        thw = min(thw, _round_up(hw, 128))
    n_row_tiles = _cdiv(rows, tb)
    n_hw_tiles = _cdiv(hw, thw)

    stats_kernel = functools.partial(_stats_kernel, eps=eps, hw=hw, thw=thw)
    scale, shift = pl.pallas_call(
        stats_kernel,
        out_shape=(jax.ShapeDtypeStruct((rows, 1), jnp.float32),
                   jax.ShapeDtypeStruct((rows, 1), jnp.float32)),
        grid_spec=pltpu.PrefetchScalarGridSpec(
            num_scalar_prefetch=0,
            grid=(n_row_tiles, n_hw_tiles),
            in_specs=[
                pl.BlockSpec((tb, thw), lambda i, k: (i, k)),
                pl.BlockSpec((tb, thw), lambda i, k: (i, k)),
            ],
            out_specs=[
                pl.BlockSpec((tb, 1), lambda i, k: (i, 0)),
                pl.BlockSpec((tb, 1), lambda i, k: (i, 0)),
            ],
            scratch_shapes=[pltpu.VMEM((tb, 1), jnp.float32)] * 4,
        ),
        compiler_params=pltpu.CompilerParams(
            dimension_semantics=("parallel", "arbitrary"),
            vmem_limit_bytes=int(vmem_limit),
        ),
        cost_estimate=pl.CostEstimate(
            flops=8 * rows * hw,
            transcendentals=3 * rows,
            bytes_accessed=2 * rows * hw * dsize,
        ),
    )(c2, s2)

    out2 = pl.pallas_call(
        _apply_kernel,
        out_shape=jax.ShapeDtypeStruct((rows, hw), c2.dtype),
        grid_spec=pltpu.PrefetchScalarGridSpec(
            num_scalar_prefetch=0,
            grid=(n_row_tiles, n_hw_tiles),
            in_specs=[
                pl.BlockSpec((tb, thw), lambda i, k: (i, k)),
                pl.BlockSpec((tb, 1), lambda i, k: (i, 0)),
                pl.BlockSpec((tb, 1), lambda i, k: (i, 0)),
            ],
            out_specs=pl.BlockSpec((tb, thw), lambda i, k: (i, k)),
        ),
        compiler_params=pltpu.CompilerParams(
            dimension_semantics=("parallel", "parallel"),
            vmem_limit_bytes=int(vmem_limit),
        ),
        cost_estimate=pl.CostEstimate(
            flops=2 * rows * hw,
            transcendentals=0,
            bytes_accessed=2 * rows * hw * dsize,
        ),
    )(c2, scale, shift)
    return out2


# ----------------------------------------------------------------------------
# Public entry point
# ----------------------------------------------------------------------------
def adain_pallas(content, style, eps=1e-05, *, force_two_pass=False,
                 two_pass_hw_tile=None):
    """content, style: [B, C, H, W] -> stylized content [B, C, H, W]."""
    B, C, H, W = content.shape
    assert style.shape == content.shape
    rows, hw = B * C, H * W
    dsize = jnp.dtype(content.dtype).itemsize
    pipe_budget, vmem_limit = _vmem_budgets()

    c2 = content.reshape(rows, hw)
    s2 = style.reshape(rows, hw)

    tb = None if force_two_pass else _single_pass_row_tile(rows, hw, dsize,
                                                           pipe_budget)
    if tb is None:
        out2 = _adain_two_pass(c2, s2, rows, hw, eps, dsize, pipe_budget,
                               vmem_limit, two_pass_hw_tile)
    else:
        out2 = _adain_single_pass(c2, s2, rows, hw, eps, dsize, tb, vmem_limit)
    return out2.reshape(B, C, H, W)


# ----------------------------------------------------------------------------
# Deterministic style generation (plain-JAX glue, mirrors the PyTorch helpers)
# ----------------------------------------------------------------------------
def _apply_noise(content, strength, key):
    noise = jax.random.normal(key, content.shape, content.dtype) * strength
    return content + noise


def _apply_contrast(content, strength, key):
    return jax.nn.relu(content * (1.0 + strength))


def _apply_boundary(content, strength, key):
    # Depthwise 3x3 conv with deterministically initialized weights
    # (stands in for the randomly-initialized nn.Conv2d in the reference).
    C = content.shape[1]
    w = jax.random.normal(key, (C, 1, 3, 3), content.dtype) * (1.0 / 3.0)
    high_freq = lax.conv_general_dilated(
        content, w,
        window_strides=(1, 1), padding="SAME",
        feature_group_count=C,
        dimension_numbers=("NCHW", "OIHW", "NCHW"),
    )
    return content + strength * high_freq


def _apply_low_contrast(content, strength, key):
    mean = jnp.mean(content, axis=(2, 3), keepdims=True)
    return mean + strength * (content - mean)


def generate_medical_style_from_content(content, strength, key):
    # Traced (jit-safe) stand-in for python random.choice over 4 transforms.
    choice_key, op_key = jax.random.split(key)
    idx = jax.random.randint(choice_key, (), 0, 4)
    return lax.switch(
        idx,
        [
            lambda: _apply_noise(content, strength, op_key),
            lambda: _apply_contrast(content, strength, op_key),
            lambda: _apply_boundary(content, strength, op_key),
            lambda: _apply_low_contrast(content, strength, op_key),
        ],
    )


def adain_forward(content, style=None, *, strength=0.5, eps=1e-05,
                  disabled=False, key=None):
    if disabled:
        return content
    if style is None:
        if key is None:
            key = jax.random.PRNGKey(0)
        style = generate_medical_style_from_content(content, strength, key)
    return adain_pallas(content, style, eps=eps)


# ----------------------------------------------------------------------------
if __name__ == "__main__":
    key = jax.random.PRNGKey(0)
    k_content, k_style, k_auto = jax.random.split(key, 3)

    def ref(c, s, eps=1e-05):
        n = c.shape[2] * c.shape[3]
        cm = jnp.mean(c, axis=(2, 3), keepdims=True)
        sm = jnp.mean(s, axis=(2, 3), keepdims=True)
        cs = jnp.sqrt(jnp.sum((c - cm) ** 2, axis=(2, 3), keepdims=True) / max(n - 1, 1))
        ss = jnp.sqrt(jnp.sum((s - sm) ** 2, axis=(2, 3), keepdims=True) / max(n - 1, 1))
        return (c - cm) / (cs + eps) * ss + sm

    # 1) Aligned shape, explicit style (single-pass full-hw path).
    B, C, H, W = 2, 4, 16, 16
    content = jax.random.normal(k_content, (B, C, H, W), jnp.float32)
    style = jax.random.normal(k_style, (B, C, H, W), jnp.float32) * 2.0 + 1.0
    out = adain_forward(content, style, strength=0.5)
    jax.block_until_ready(out)
    assert jnp.allclose(out, ref(content, style), atol=1e-4, rtol=1e-4), \
        "mismatch vs reference (aligned path)"

    # 2) Style generated from content (deterministic, jit-safe glue path).
    out_auto = adain_forward(content, style=None, strength=0.5, key=k_auto)
    jax.block_until_ready(out_auto)

    # 3) Non-aligned shape (rows=6, hw=225): partial row/lane blocks handled
    #    in-kernel, no wrapper-side pad or crop.
    c_odd = jax.random.normal(k_content, (2, 3, 15, 15), jnp.float32)
    s_odd = jax.random.normal(k_style, (2, 3, 15, 15), jnp.float32) * 1.5 - 0.5
    out_odd = adain_forward(c_odd, s_odd)
    jax.block_until_ready(out_odd)
    assert jnp.allclose(out_odd, ref(c_odd, s_odd), atol=1e-4, rtol=1e-4), \
        "mismatch vs reference (partial-block path)"

    # 4) Large-H*W fallback (forced at a small shape): hw-tiled stats + apply,
    #    including a partial lane tile (hw=323, thw=128) and nonzero mean data.
    c_tp = jax.random.normal(k_content, (2, 4, 17, 19), jnp.float32) * 3.0 + 5.0
    s_tp = jax.random.normal(k_style, (2, 4, 17, 19), jnp.float32) * 0.5 - 2.0
    out_tp = adain_pallas(c_tp, s_tp, force_two_pass=True, two_pass_hw_tile=128)
    jax.block_until_ready(out_tp)
    assert jnp.allclose(out_tp, ref(c_tp, s_tp), atol=1e-4, rtol=1e-4), \
        "mismatch vs reference (hw-tiled fallback path)"

    print("KERNEL_OK")
</pallas_src>

<mosaic_0001>
module attributes {stable_mosaic.version = 11 : i64} {
  func.func @_adain_rows_kernel(%arg0: i32, %arg1: memref<8x256xf32, #tpu.memory_space<vmem>>, %arg2: memref<8x256xf32, #tpu.memory_space<vmem>>, %arg3: memref<8x256xf32, #tpu.memory_space<vmem>>) attributes {dimension_semantics = [#tpu.dimension_semantics<parallel>], iteration_bounds = array<i64: 1>, scalar_prefetch = 0 : i64, scratch_operands = 0 : i64, tpu.core_type = #tpu.core_type<tc>, window_params = [{transform_indices = @transform_0, window_bounds = array<i64: 8, 256>}, {transform_indices = @transform_1, window_bounds = array<i64: 8, 256>}, {transform_indices = @transform_2, window_bounds = array<i64: 8, 256>}]} {
    %c0 = arith.constant 0 : index
    %c0_0 = arith.constant 0 : index
    %0 = vector.load %arg1[%c0, %c0_0] : memref<8x256xf32, #tpu.memory_space<vmem>>, vector<8x256xf32>
    %cst = arith.constant dense<0.000000e+00> : vector<8xf32>
    %1 = vector.multi_reduction <add>, %0, %cst [1] : vector<8x256xf32> to vector<8xf32>
    %2 = vector.shape_cast %1 : vector<8xf32> to vector<8x1xf32>
    %cst_1 = arith.constant 3.906250e-03 : f32
    %3 = vector.broadcast %cst_1 : f32 to vector<8x1xf32>
    %4 = arith.mulf %2, %3 : vector<8x1xf32>
    %c0_2 = arith.constant 0 : index
    %c0_3 = arith.constant 0 : index
    %5 = vector.load %arg2[%c0_2, %c0_3] : memref<8x256xf32, #tpu.memory_space<vmem>>, vector<8x256xf32>
    %cst_4 = arith.constant dense<0.000000e+00> : vector<8xf32>
    %6 = vector.multi_reduction <add>, %5, %cst_4 [1] : vector<8x256xf32> to vector<8xf32>
    %7 = vector.shape_cast %6 : vector<8xf32> to vector<8x1xf32>
    %cst_5 = arith.constant 3.906250e-03 : f32
    %8 = vector.broadcast %cst_5 : f32 to vector<8x1xf32>
    %9 = arith.mulf %7, %8 : vector<8x1xf32>
    %c0_6 = arith.constant 0 : index
    %c0_7 = arith.constant 0 : index
    %10 = vector.load %arg1[%c0_6, %c0_7] : memref<8x256xf32, #tpu.memory_space<vmem>>, vector<8x256xf32>
    %11 = vector.broadcast %4 : vector<8x1xf32> to vector<8x256xf32>
    %12 = arith.subf %10, %11 : vector<8x256xf32>
    %c0_8 = arith.constant 0 : index
    %c0_9 = arith.constant 0 : index
    %13 = vector.load %arg2[%c0_8, %c0_9] : memref<8x256xf32, #tpu.memory_space<vmem>>, vector<8x256xf32>
    %14 = vector.broadcast %9 : vector<8x1xf32> to vector<8x256xf32>
    %15 = arith.subf %13, %14 : vector<8x256xf32>
    %16 = arith.mulf %12, %12 : vector<8x256xf32>
    %cst_10 = arith.constant dense<0.000000e+00> : vector<8xf32>
    %17 = vector.multi_reduction <add>, %16, %cst_10 [1] : vector<8x256xf32> to vector<8xf32>
    %18 = vector.shape_cast %17 : vector<8xf32> to vector<8x1xf32>
    %cst_11 = arith.constant 0.00392156886 : f32
    %19 = vector.broadcast %cst_11 : f32 to vector<8x1xf32>
    %20 = arith.mulf %18, %19 : vector<8x1xf32>
    %21 = math.sqrt %20 : vector<8x1xf32>
    %22 = arith.mulf %15, %15 : vector<8x256xf32>
    %cst_12 = arith.constant dense<0.000000e+00> : vector<8xf32>
    %23 = vector.multi_reduction <add>, %22, %cst_12 [1] : vector<8x256xf32> to vector<8xf32>
    %24 = vector.shape_cast %23 : vector<8xf32> to vector<8x1xf32>
    %cst_13 = arith.constant 0.00392156886 : f32
    %25 = vector.broadcast %cst_13 : f32 to vector<8x1xf32>
    %26 = arith.mulf %24, %25 : vector<8x1xf32>
    %27 = math.sqrt %26 : vector<8x1xf32>
    %cst_14 = arith.constant 9.99999974E-6 : f32
    %28 = vector.broadcast %cst_14 : f32 to vector<8x1xf32>
    %29 = arith.addf %21, %28 : vector<8x1xf32>
    %30 = tpu.reciprocal %29 {approx = true} : vector<8x1xf32> -> vector<8x1xf32>
    %31 = arith.mulf %29, %30 : vector<8x1xf32>
    %cst_15 = arith.constant 2.000000e+00 : f32
    %32 = vector.broadcast %cst_15 : f32 to vector<8x1xf32>
    %33 = arith.subf %32, %31 : vector<8x1xf32>
    %34 = arith.mulf %30, %33 : vector<8x1xf32>
    %35 = arith.mulf %27, %34 : vector<8x1xf32>
    %36 = vector.broadcast %35 : vector<8x1xf32> to vector<8x256xf32>
    %37 = arith.mulf %12, %36 : vector<8x256xf32>
    %38 = vector.broadcast %9 : vector<8x1xf32> to vector<8x256xf32>
    %39 = arith.addf %37, %38 : vector<8x256xf32>
    %c0_16 = arith.constant 0 : index
    %c0_17 = arith.constant 0 : index
    %40 = vector.load %arg3[%c0_16, %c0_17] : memref<8x256xf32, #tpu.memory_space<vmem>>, vector<8x256xf32>
    tpu.vector_store %arg3[%c0_16, %c0_17], %39 {strides = array<i32>} : memref<8x256xf32, #tpu.memory_space<vmem>>, vector<8x256xf32>,
    return
  }
  func.func @transform_0(%arg0: i32) -> (i32, i32) {
    %c0_i32 = arith.constant 0 : i32
    %c0_i32_0 = arith.constant 0 : i32
    return %arg0, %c0_i32 : i32, i32
  }
  func.func @transform_1(%arg0: i32) -> (i32, i32) {
    %c0_i32 = arith.constant 0 : i32
    %c0_i32_0 = arith.constant 0 : i32
    return %arg0, %c0_i32 : i32, i32
  }
  func.func @transform_2(%arg0: i32) -> (i32, i32) {
    %c0_i32 = arith.constant 0 : i32
    %c0_i32_0 = arith.constant 0 : i32
    return %arg0, %c0_i32 : i32, i32
  }
}

</mosaic_0001>

<llo_original>
// kernel: tpu_custom_call.1
$region0: #{tpu_custom_call.1}
  #allocation0 [shape = 'u32[]', space=smem, size = 0x4, offset = 0x4, fixed_abs, tag = 'smem constant byte address 0x4 - core index']
  #allocation1 [shape = 'u32[144,128]{1,0:T(1,128)}', space=vmem, size = 0x12000, scoped, tag = 'internal scratch']
  %s0 = inlined_call_operand.hbm [shape: f32[8,256], index: 0, kind: input, shape index: {}]
  %s1 = inlined_call_operand.hbm [shape: f32[8,256], index: 1, kind: input, shape index: {}]
  %s2 = inlined_call_operand.hbm [shape: f32[8,256], index: 2, kind: output, shape index: {}]
  %s3 = sld [smem:[#allocation0]]
  $region26: #{tpu_custom_call.1} parent=0
    _
  %s5 = ssub.s32 1, %s3
  %s6 = scalar_select 0, %s5, %s3
  $region1: #{tpu_custom_call.1} parent=0
    #allocation2 [shape = 'u8[8192]{0}', space=vmem, size = 0x2000, scoped, tag = 'input window, operand 0, single buffered']
    #allocation3 [shape = 's32[1]{0}', space=sflag, size = 0x4, scoped, tag = 'scoped memory for tpu_custom_call.1']
    #allocation4 [shape = 's32[1]{0}', space=sflag, size = 0x4, scoped, tag = 'scoped memory for tpu_custom_call.1']
    #allocation5 [shape = 'u8[8192]{0}', space=vmem, size = 0x2000, scoped, tag = 'input window, operand 1, single buffered']
    #allocation6 [shape = 's32[1]{0}', space=sflag, size = 0x4, scoped, tag = 'scoped memory for tpu_custom_call.1']
    #allocation7 [shape = 'u8[8192]{0}', space=vmem, size = 0x2000, scoped, tag = 'output window, operand 0, single buffered']
    %7 = vsyncpa [#allocation3], 0
    %8 = vsyncpa [#allocation6], 0
    %9 = vsyncpa [#allocation4], 0
    // Predicated region
    $region2: #{tpu_custom_call.1} parent=1 // pred_check
      _
    $region3: #{tpu_custom_call.1} parent=1 // pred_check_branch
      %11 = sbr.rel (0) target = $region5
    $region4: #{tpu_custom_call.1} parent=1 // pred_region
      %s13 = ssub.s32 256, 256
      %14 = vsyncadd [#allocation3], %s13
      %s16 = sshll.u32 [#allocation2], 4
      %s17 = int_to_ptr.vmem [resolvable:$true] %s16
      %19 = dma.hbm_to_vmem [thread:$0]  %s0, 256, %s17, [#allocation3]
    $region5: #{tpu_custom_call.1} parent=1 // pred_fallthru
      _
    // Predicated region
    $region6: #{tpu_custom_call.1} parent=1 // pred_check
      _
    $region7: #{tpu_custom_call.1} parent=1 // pred_check_branch
      %21 = sbr.rel (0) target = $region9
    $region8: #{tpu_custom_call.1} parent=1 // pred_region
      %s23 = ssub.s32 256, 256
      %24 = vsyncadd [#allocation6], %s23
      %s26 = sshll.u32 [#allocation5], 4
      %s27 = int_to_ptr.vmem [resolvable:$true] %s26
      %29 = dma.hbm_to_vmem [thread:$0]  %s1, 256, %s27, [#allocation6]
    $region9: #{tpu_custom_call.1} parent=1 // pred_fallthru
      _
    // Predicated region
    $region10: #{tpu_custom_call.1} parent=1 // pred_check
      _
    $region11: #{tpu_custom_call.1} parent=1 // pred_check_branch
      %31 = sbr.rel (0) target = $region13
    $region12: #{tpu_custom_call.1} parent=1 // pred_region
      %32 = dma.done [#allocation3], 256
    $region13: #{tpu_custom_call.1} parent=1 // pred_fallthru
      _
    // Predicated region
    $region14: #{tpu_custom_call.1} parent=1 // pred_check
      _
    $region15: #{tpu_custom_call.1} parent=1 // pred_check_branch
      %34 = sbr.rel (0) target = $region17
    $region16: #{tpu_custom_call.1} parent=1 // pred_region
      %35 = dma.done [#allocation6], 256
    $region17: #{tpu_custom_call.1} parent=1 // pred_fallthru
      _
    %v36 = vld [vmem:[#allocation2] sm:$0xff]
    %v37 = vld [vmem:[#allocation2 + $0x8] sm:$0xff]
    %v38 = vadd.f32 %v36, %v37
    %39 = vadd.xlane.f32.xlu0 %v38
    %v40 = vpop.xlane.xlu0 %39
    %v41 = vmul.f32 %v40, 0.00390625
    %v42 = vld [vmem:[#allocation5] sm:$0xff]
    %v43 = vld [vmem:[#allocation5 + $0x8] sm:$0xff]
    %v44 = vadd.f32 %v42, %v43
    %45 = vadd.xlane.f32.xlu0 %v44
    %v46 = vpop.xlane.xlu0 %45
    %v47 = vmul.f32 %v46, 0.00390625
    %v48 = vsub.f32 %v36, %v41
    %v49 = vsub.f32 %v37, %v41
    %v50 = vsub.f32 %v42, %v47
    %v51 = vsub.f32 %v43, %v47
    %v52 = vmul.f32 %v48, %v48
    %v53 = vmul.f32 %v49, %v49
    %v54 = vadd.f32 %v52, %v53
    %55 = vadd.xlane.f32.xlu0 %v54
    %v56 = vpop.xlane.xlu0 %55
    %v57 = vmul.f32 %v56, 0.003921569
    %v58 = vrsqrt.pop %v57
    %v59 = vmul.f32 %v57, %v58
    %vm60 = vcmp.eq.f32.partialorder %v57, inf
    %v61 = vsel %vm60, %v57, %v59
    %vm62 = vcmp.eq.f32.partialorder %v57, 0.0
    %v63 = vand.u32 %v57, 2147483648
    %v64 = vsel %vm62, %v63, %v61
    %v65 = vmul.f32 %v50, %v50
    %v66 = vmul.f32 %v51, %v51
    %v67 = vadd.f32 %v65, %v66
    %68 = vadd.xlane.f32.xlu0 %v67
    %v69 = vpop.xlane.xlu0 %68
    %v70 = vmul.f32 %v69, 0.003921569
    %v71 = vrsqrt.pop %v70
    %v72 = vmul.f32 %v70, %v71
    %vm73 = vcmp.eq.f32.partialorder %v70, inf
    %v74 = vsel %vm73, %v70, %v72
    %vm75 = vcmp.eq.f32.partialorder %v70, 0.0
    %v76 = vand.u32 %v70, 2147483648
    %v77 = vsel %vm75, %v76, %v74
    %v78 = vadd.f32 %v64, 1e-05
    %v79 = vrcp.pop %v78
    %v80 = vmul.f32 %v78, %v79
    %v81 = vsub.f32 2.0, %v80
    %v82 = vmul.f32 %v79, %v81
    %v83 = vmul.f32 %v77, %v82
    %v84 = vmul.f32 %v48, %v83
    %v85 = vmul.f32 %v49, %v83
    %v86 = vadd.f32 %v84, %v47
    %v87 = vadd.f32 %v85, %v47
    %88 = vst [vmem:[#allocation7] sm:$0xff] %v86
    %89 = vst [vmem:[#allocation7 + $0x8] sm:$0xff] %v87
    // Predicated region
    $region18: #{tpu_custom_call.1} parent=1 // pred_check
      _
    $region19: #{tpu_custom_call.1} parent=1 // pred_check_branch
      %91 = sbr.rel (0) target = $region21
    $region20: #{tpu_custom_call.1} parent=1 // pred_region
      %s93 = ssub.s32 256, 256
      %94 = vsyncadd [#allocation4], %s93
      %s96 = sshll.u32 [#allocation7], 4
      %s97 = int_to_ptr.vmem [resolvable:$true] %s96
      %99 = dma.vmem_to_hbm [thread:$0]  %s97, 256, %s2, [#allocation4]
    $region21: #{tpu_custom_call.1} parent=1 // pred_fallthru
      _
    // Predicated region
    $region22: #{tpu_custom_call.1} parent=1 // pred_check
      _
    $region23: #{tpu_custom_call.1} parent=1 // pred_check_branch
      %101 = sbr.rel (0) target = $region25
    $region24: #{tpu_custom_call.1} parent=1 // pred_region
      %102 = dma.done [#allocation4], 256
    $region25: #{tpu_custom_call.1} parent=1 // pred_fallthru
      _
    %103 = vsyncpa [#allocation3], 1
    %104 = vsyncpa [#allocation6], 1
    %105 = vsyncpa [#allocation4], 1

</llo_original>
